<compile_context>
chip_gen: v6e
topology: v6e:2x2x1
jax: 0.10.0
libtpu: 0.0.40
codegen_flags: <defaults>
</compile_context>

<pallas_src>
import functools

import jax
import jax.numpy as jnp
from jax.experimental import pallas as pl
from jax.experimental.pallas import tpu as pltpu

FRAME_DIM = 8
ESN_DIM = 24
HIDDEN_DIM = 32
NUM_HIDDEN_LAYERS = 3   # hidden stack = combined2hidden 2nd Linear + (N-1) hidden2hidden
BATCH = 2


def _round_up(x, m):
    return ((x + m - 1) // m) * m


def _mlp_kernel(frame_dim, in_dim, hidden_dim, n_stack, bias_col,
                c_ref,     # (F+E, TB)        transposed activations, batch on lanes
                p_ref,     # (R, bias_col+1)  packed params, resident in VMEM
                out_ref):  # (2F, TB)         [tanh(slope); intercept], lane-dense
    F, H, L = frame_dim, hidden_dim, n_stack

    # Layer 1: single K=(F+E) matmul (concat already fused in the slab).
    h = (jnp.dot(p_ref[0:H, 0:in_dim], c_ref[...],
                 preferred_element_type=jnp.float32)
         + p_ref[0:H, bias_col:bias_col + 1])
    h = jnp.maximum(h, 0.0)

    # Hidden stack (combined2hidden 2nd Linear + hidden2hidden layers),
    # statically unrolled (tiny trip count -> full LLO visibility).
    for l in range(L):
        r0 = H * (1 + l)
        h = (jnp.dot(p_ref[r0:r0 + H, 0:H], h,
                     preferred_element_type=jnp.float32)
             + p_ref[r0:r0 + H, bias_col:bias_col + 1])
        h = jnp.maximum(h, 0.0)

    # Fused heads: rows [0, F) = slope (tanh), rows [F, 2F) = intercept.
    r0 = H * (1 + L)
    head = (jnp.dot(p_ref[r0:r0 + 2 * F, 0:H], h,
                    preferred_element_type=jnp.float32)
            + p_ref[r0:r0 + 2 * F, bias_col:bias_col + 1])
    out_ref[0:F, :] = jnp.tanh(head[0:F, :])
    out_ref[F:2 * F, :] = head[F:2 * F, :]


def _choose_batch_tile(batch):
    """Pick the lane-axis (batch) tile and the padded batch extent."""
    # Small/medium batch: one full-array block (legal even when the lane dim
    # isn't a multiple of 128) -> no padding, no post-slice copy, grid=(1,).
    if batch <= 1024:
        return batch, batch
    # Large batch: lane tiles in multiples of 128, capped at 2048, and at
    # least 2 grid steps so "parallel" can shard across v7x's 2 TensorCores.
    tb = min(2048, _round_up((batch + 1) // 2, 128))
    return tb, _round_up(batch, tb)


def neural_network_forward(x_frame, h_esn, packed, *, frame_dim, esn_dim,
                           hidden_dim, num_hidden_stack):
    """NeuralNetwork.forward (toeplitz=False) as one fused pallas_call."""
    batch = x_frame.shape[0]
    F, E, H, L = frame_dim, esn_dim, hidden_dim, num_hidden_stack
    in_dim = F + E
    n_rows, n_cols = packed.shape
    bias_col = n_cols - 1

    # Transposed activation slab (batch on the lane axis); the concat of the
    # original forward is fused by stacking along the feature (sublane) axis.
    c_t = jnp.concatenate([x_frame.T, h_esn.T], axis=0)   # (F+E, B)

    tb, batch_pad = _choose_batch_tile(batch)
    if batch_pad != batch:
        c_t = jnp.pad(c_t, ((0, 0), (0, batch_pad - batch)))
    num_tiles = batch_pad // tb

    kernel = functools.partial(_mlp_kernel, F, in_dim, H, L, bias_col)

    # Streamed activations: per-step lane tile; deeper pipelining only when
    # the grid is deep enough for it to hide anything.
    if num_tiles >= 4:
        act_spec = pl.BlockSpec((in_dim, tb), lambda i: (0, i),
                                pipeline_mode=pl.Buffered(3))
    else:
        act_spec = pl.BlockSpec((in_dim, tb), lambda i: (0, i))
    # Packed parameters: constant block index -> DMA'd once, resident in VMEM.
    param_spec = pl.BlockSpec((n_rows, n_cols), lambda i: (0, 0))
    out_spec = pl.BlockSpec((2 * F, tb), lambda i: (0, i))

    out_t = pl.pallas_call(
        kernel,
        out_shape=jax.ShapeDtypeStruct((2 * F, batch_pad), jnp.float32),
        grid=(num_tiles,),
        in_specs=[act_spec, param_spec],
        out_specs=out_spec,
        compiler_params=pltpu.CompilerParams(
            dimension_semantics=("parallel",)),
    )(c_t, packed)

    slope = out_t[:F, :batch].T
    intercept = out_t[F:, :batch].T
    return slope, intercept


def init_params(key, frame_dim, esn_dim, hidden_dim, num_hidden_layers):
    """Deterministic synthetic parameters in native PyTorch (out, in) layout.

    wh[0]  = combined2hidden's second Linear, wh[1:] = hidden2hidden layers,
    whead  = [hidden2slope ; hidden2intercept] stacked along the output dim.
    """
    F, E, H = frame_dim, esn_dim, hidden_dim
    L = num_hidden_layers  # W2 + (num_hidden_layers - 1) hidden2hidden
    keys = jax.random.split(key, 6)
    s = 0.1
    return {
        "w1": s * jax.random.normal(keys[0], (H, F + E), jnp.float32),
        "b1": s * jax.random.normal(keys[1], (H,), jnp.float32),
        "wh": s * jax.random.normal(keys[2], (L, H, H), jnp.float32),
        "bh": s * jax.random.normal(keys[3], (L, H), jnp.float32),
        "whead": s * jax.random.normal(keys[4], (2 * F, H), jnp.float32),
        "bhead": s * jax.random.normal(keys[5], (2 * F,), jnp.float32),
    }


def pack_params(p, frame_dim, esn_dim, hidden_dim):
    """Pack every weight and bias into one (rows, max_in+1) f32 buffer.

    Row layout: [layer1 (H rows)] [hidden stack (L*H rows)] [heads (2F rows)].
    Columns [0, in_dim) hold the (out, in) weight, last column holds the bias.
    """
    F, E, H = frame_dim, esn_dim, hidden_dim
    L = p["wh"].shape[0]
    k_max = max(F + E, H)
    bias_col = k_max
    rows = H + L * H + 2 * F
    buf = jnp.zeros((rows, k_max + 1), jnp.float32)
    buf = buf.at[0:H, 0:F + E].set(p["w1"])
    buf = buf.at[0:H, bias_col].set(p["b1"])
    for l in range(L):
        r0 = H * (1 + l)
        buf = buf.at[r0:r0 + H, 0:H].set(p["wh"][l])
        buf = buf.at[r0:r0 + H, bias_col].set(p["bh"][l])
    r0 = H * (1 + L)
    buf = buf.at[r0:r0 + 2 * F, 0:H].set(p["whead"])
    buf = buf.at[r0:r0 + 2 * F, bias_col].set(p["bhead"])
    return buf


def reference_forward(x_frame, h_esn, p):
    """Pure-JAX reference of the original module's forward pass."""
    F = x_frame.shape[-1]
    combined = jnp.concatenate([x_frame, h_esn], axis=-1)
    h = jnp.maximum(combined @ p["w1"].T + p["b1"], 0.0)
    for l in range(p["wh"].shape[0]):
        h = jnp.maximum(h @ p["wh"][l].T + p["bh"][l], 0.0)
    head = h @ p["whead"].T + p["bhead"]
    slope = jnp.tanh(head[:, :F])
    intercept = head[:, F:]
    return slope, intercept


if __name__ == "__main__":
    key = jax.random.PRNGKey(0)
    k_x, k_h, k_p = jax.random.split(key, 3)

    x_frame = jax.random.normal(k_x, (BATCH, FRAME_DIM), jnp.float32)
    h_esn = jax.random.normal(k_h, (BATCH, ESN_DIM), jnp.float32)
    params = init_params(k_p, FRAME_DIM, ESN_DIM, HIDDEN_DIM, NUM_HIDDEN_LAYERS)
    packed = pack_params(params, FRAME_DIM, ESN_DIM, HIDDEN_DIM)

    slope, intercept = neural_network_forward(
        x_frame, h_esn, packed,
        frame_dim=FRAME_DIM, esn_dim=ESN_DIM, hidden_dim=HIDDEN_DIM,
        num_hidden_stack=NUM_HIDDEN_LAYERS)
    jax.block_until_ready((slope, intercept))

    ref_slope, ref_intercept = reference_forward(x_frame, h_esn, params)
    assert slope.shape == (BATCH, FRAME_DIM) and intercept.shape == (BATCH, FRAME_DIM)
    assert jnp.allclose(slope, ref_slope, atol=1e-5, rtol=1e-5)
    assert jnp.allclose(intercept, ref_intercept, atol=1e-5, rtol=1e-5)

    print("KERNEL_OK")
</pallas_src>

<mosaic_0001>
module attributes {stable_mosaic.version = 11 : i64} {
  func.func @_mlp_kernel(%arg0: i32, %arg1: memref<32x2xf32, #tpu.memory_space<vmem>>, %arg2: memref<144x33xf32, #tpu.memory_space<vmem>>, %arg3: memref<16x2xf32, #tpu.memory_space<vmem>>) attributes {dimension_semantics = [#tpu.dimension_semantics<parallel>], iteration_bounds = array<i64: 1>, scalar_prefetch = 0 : i64, scratch_operands = 0 : i64, tpu.core_type = #tpu.core_type<tc>, window_params = [{transform_indices = @transform_0, window_bounds = array<i64: 32, 2>}, {pipeline_mode = #tpu.pipeline_mode<synchronous>, transform_indices = @transform_1, window_bounds = array<i64: 144, 33>}, {transform_indices = @transform_2, window_bounds = array<i64: 16, 2>}]} {
    %c0 = arith.constant 0 : index
    %c0_0 = arith.constant 0 : index
    %0 = vector.load %arg2[%c0, %c0_0] : memref<144x33xf32, #tpu.memory_space<vmem>>, vector<32x32xf32>
    %c0_1 = arith.constant 0 : index
    %c0_2 = arith.constant 0 : index
    %1 = vector.load %arg1[%c0_1, %c0_2] : memref<32x2xf32, #tpu.memory_space<vmem>>, vector<32x2xf32>
    %cst = arith.constant dense<0.000000e+00> : vector<32x2xf32>
    %2 = tpu.matmul %0, %1, %cst {dimension_numbers = #tpu.dot_dimension_numbers<[1], [0], [0], [1], [0, 0, 1, 1], [], []>} : vector<32x32xf32>, vector<32x2xf32>, vector<32x2xf32> -> vector<32x2xf32>
    %c0_3 = arith.constant 0 : index
    %c32 = arith.constant 32 : index
    %3 = vector.load %arg2[%c0_3, %c32] : memref<144x33xf32, #tpu.memory_space<vmem>>, vector<32x1xf32>
    %4 = vector.broadcast %3 : vector<32x1xf32> to vector<32x2xf32>
    %5 = arith.addf %2, %4 : vector<32x2xf32>
    %cst_4 = arith.constant 0.000000e+00 : f32
    %6 = vector.broadcast %cst_4 : f32 to vector<32x2xf32>
    %7 = arith.maximumf %5, %6 : vector<32x2xf32>
    %c32_5 = arith.constant 32 : index
    %c0_6 = arith.constant 0 : index
    %8 = vector.load %arg2[%c32_5, %c0_6] : memref<144x33xf32, #tpu.memory_space<vmem>>, vector<32x32xf32>
    %cst_7 = arith.constant dense<0.000000e+00> : vector<32x2xf32>
    %9 = tpu.matmul %8, %7, %cst_7 {dimension_numbers = #tpu.dot_dimension_numbers<[1], [0], [0], [1], [0, 0, 1, 1], [], []>} : vector<32x32xf32>, vector<32x2xf32>, vector<32x2xf32> -> vector<32x2xf32>
    %c32_8 = arith.constant 32 : index
    %c32_9 = arith.constant 32 : index
    %10 = vector.load %arg2[%c32_8, %c32_9] : memref<144x33xf32, #tpu.memory_space<vmem>>, vector<32x1xf32>
    %11 = vector.broadcast %10 : vector<32x1xf32> to vector<32x2xf32>
    %12 = arith.addf %9, %11 : vector<32x2xf32>
    %cst_10 = arith.constant 0.000000e+00 : f32
    %13 = vector.broadcast %cst_10 : f32 to vector<32x2xf32>
    %14 = arith.maximumf %12, %13 : vector<32x2xf32>
    %c64 = arith.constant 64 : index
    %c0_11 = arith.constant 0 : index
    %15 = vector.load %arg2[%c64, %c0_11] : memref<144x33xf32, #tpu.memory_space<vmem>>, vector<32x32xf32>
    %cst_12 = arith.constant dense<0.000000e+00> : vector<32x2xf32>
    %16 = tpu.matmul %15, %14, %cst_12 {dimension_numbers = #tpu.dot_dimension_numbers<[1], [0], [0], [1], [0, 0, 1, 1], [], []>} : vector<32x32xf32>, vector<32x2xf32>, vector<32x2xf32> -> vector<32x2xf32>
    %c64_13 = arith.constant 64 : index
    %c32_14 = arith.constant 32 : index
    %17 = vector.load %arg2[%c64_13, %c32_14] : memref<144x33xf32, #tpu.memory_space<vmem>>, vector<32x1xf32>
    %18 = vector.broadcast %17 : vector<32x1xf32> to vector<32x2xf32>
    %19 = arith.addf %16, %18 : vector<32x2xf32>
    %cst_15 = arith.constant 0.000000e+00 : f32
    %20 = vector.broadcast %cst_15 : f32 to vector<32x2xf32>
    %21 = arith.maximumf %19, %20 : vector<32x2xf32>
    %c96 = arith.constant 96 : index
    %c0_16 = arith.constant 0 : index
    %22 = vector.load %arg2[%c96, %c0_16] : memref<144x33xf32, #tpu.memory_space<vmem>>, vector<32x32xf32>
    %cst_17 = arith.constant dense<0.000000e+00> : vector<32x2xf32>
    %23 = tpu.matmul %22, %21, %cst_17 {dimension_numbers = #tpu.dot_dimension_numbers<[1], [0], [0], [1], [0, 0, 1, 1], [], []>} : vector<32x32xf32>, vector<32x2xf32>, vector<32x2xf32> -> vector<32x2xf32>
    %c96_18 = arith.constant 96 : index
    %c32_19 = arith.constant 32 : index
    %24 = vector.load %arg2[%c96_18, %c32_19] : memref<144x33xf32, #tpu.memory_space<vmem>>, vector<32x1xf32>
    %25 = vector.broadcast %24 : vector<32x1xf32> to vector<32x2xf32>
    %26 = arith.addf %23, %25 : vector<32x2xf32>
    %cst_20 = arith.constant 0.000000e+00 : f32
    %27 = vector.broadcast %cst_20 : f32 to vector<32x2xf32>
    %28 = arith.maximumf %26, %27 : vector<32x2xf32>
    %c128 = arith.constant 128 : index
    %c0_21 = arith.constant 0 : index
    %29 = vector.load %arg2[%c128, %c0_21] : memref<144x33xf32, #tpu.memory_space<vmem>>, vector<16x32xf32>
    %cst_22 = arith.constant dense<0.000000e+00> : vector<16x2xf32>
    %30 = tpu.matmul %29, %28, %cst_22 {dimension_numbers = #tpu.dot_dimension_numbers<[1], [0], [0], [1], [0, 0, 1, 1], [], []>} : vector<16x32xf32>, vector<32x2xf32>, vector<16x2xf32> -> vector<16x2xf32>
    %c128_23 = arith.constant 128 : index
    %c32_24 = arith.constant 32 : index
    %31 = vector.load %arg2[%c128_23, %c32_24] : memref<144x33xf32, #tpu.memory_space<vmem>>, vector<16x1xf32>
    %32 = vector.broadcast %31 : vector<16x1xf32> to vector<16x2xf32>
    %33 = arith.addf %30, %32 : vector<16x2xf32>
    %34 = vector.extract_strided_slice %33 {offsets = [0, 0], sizes = [8, 2], strides = [1, 1]} : vector<16x2xf32> to vector<8x2xf32>
    %35 = math.tanh %34 : vector<8x2xf32>
    %c0_25 = arith.constant 0 : index
    %c0_26 = arith.constant 0 : index
    %36 = vector.load %arg3[%c0_25, %c0_26] : memref<16x2xf32, #tpu.memory_space<vmem>>, vector<8x2xf32>
    tpu.vector_store %arg3[%c0_25, %c0_26], %35 {strides = array<i32>} : memref<16x2xf32, #tpu.memory_space<vmem>>, vector<8x2xf32>,
    %37 = vector.extract_strided_slice %33 {offsets = [8, 0], sizes = [8, 2], strides = [1, 1]} : vector<16x2xf32> to vector<8x2xf32>
    %c8 = arith.constant 8 : index
    %c0_27 = arith.constant 0 : index
    %38 = vector.load %arg3[%c8, %c0_27] : memref<16x2xf32, #tpu.memory_space<vmem>>, vector<8x2xf32>
    tpu.vector_store %arg3[%c8, %c0_27], %37 {strides = array<i32>} : memref<16x2xf32, #tpu.memory_space<vmem>>, vector<8x2xf32>,
    return
  }
  func.func @transform_0(%arg0: i32) -> (i32, i32) {
    %c0_i32 = arith.constant 0 : i32
    %c0_i32_0 = arith.constant 0 : i32
    return %c0_i32, %arg0 : i32, i32
  }
  func.func @transform_1(%arg0: i32) -> (i32, i32) {
    %c0_i32 = arith.constant 0 : i32
    %c0_i32_0 = arith.constant 0 : i32
    %c0_i32_1 = arith.constant 0 : i32
    return %c0_i32, %c0_i32_0 : i32, i32
  }
  func.func @transform_2(%arg0: i32) -> (i32, i32) {
    %c0_i32 = arith.constant 0 : i32
    %c0_i32_0 = arith.constant 0 : i32
    return %c0_i32, %arg0 : i32, i32
  }
}

</mosaic_0001>

<llo_original>
// kernel: tpu_custom_call.1
$region0: #{tpu_custom_call.1}
  #allocation0 [shape = 'u32[]', space=smem, size = 0x4, offset = 0x4, fixed_abs, tag = 'smem constant byte address 0x4 - core index']
  #allocation1 [shape = 'u32[144,128]{1,0:T(1,128)}', space=vmem, size = 0x12000, scoped, tag = 'internal scratch']
  %s0 = inlined_call_operand.vmem [shape: f32[32,2], index: 0, kind: input, shape index: {}]
  %s1 = inlined_call_operand.vmem [shape: f32[144,33], index: 1, kind: input, shape index: {}]
  %s2 = inlined_call_operand.vmem [shape: f32[16,2], index: 2, kind: output, shape index: {}]
  %s3 = sld [smem:[#allocation0]]
  $region18: #{tpu_custom_call.1} parent=0
    _
  %s5 = ssub.s32 1, %s3
  %s6 = scalar_select 0, %s5, %s3
  // Predicated region
  $region2: #{tpu_custom_call.1} parent=0 // pred_check
    _
  $region3: #{tpu_custom_call.1} parent=0 // pred_check_branch
    %8 = sbr.rel (0) target = $region5
  $region4: #{tpu_custom_call.1} parent=0 // pred_region
    _
  $region5: #{tpu_custom_call.1} parent=0 // pred_fallthru
    _
  // Predicated region
  $region6: #{tpu_custom_call.1} parent=0 // pred_check
    _
  $region7: #{tpu_custom_call.1} parent=0 // pred_check_branch
    %10 = sbr.rel (0) target = $region9
  $region8: #{tpu_custom_call.1} parent=0 // pred_region
    _
  $region9: #{tpu_custom_call.1} parent=0 // pred_fallthru
    _
  %v11 = vld [vmem:[%s1] sm:$0xff]
  %v12 = vld [vmem:[%s1 + $0x8] sm:$0xff]
  %v13 = vld [vmem:[%s1 + $0x10] sm:$0xff]
  %v14 = vld [vmem:[%s1 + $0x18] sm:$0xff]
  %v15 = vld [vmem:[%s0] sm:$0xff]
  %v16 = vld [vmem:[%s0 + $0x8] sm:$0xff]
  %v17 = vld [vmem:[%s0 + $0x10] sm:$0xff]
  %v18 = vld [vmem:[%s0 + $0x18] sm:$0xff]
  %20 = vset.pattern.permute.xlu0 32
  %21 = vperm.xlu0 %20, %v11
  %v22 = vpop.permute.xlu0 %21
  %25 = vset.pattern.permute.xlu0 32
  %26 = vperm.xlu0 %25, %v12
  %v27 = vpop.permute.xlu0 %26
  %30 = vset.pattern.permute.xlu0 32
  %31 = vperm.xlu0 %30, %v13
  %v32 = vpop.permute.xlu0 %31
  %35 = vset.pattern.permute.xlu0 32
  %36 = vperm.xlu0 %35, %v14
  %v37 = vpop.permute.xlu0 %36
  %vm39 = vcmask 261120
  %v40 = vsel %vm39, %v11, 0
  %v42 = vsel %vm39, %v12, 0
  %v44 = vsel %vm39, %v13, 0
  %v46 = vsel %vm39, %v14, 0
  %48 = vmatprep.subr.mxu0 0.0
  %49 = vmatpush1.msra.mxu0 0.0
  %50 = vmatprep.subr.mxu0 0.0
  %51 = vmatpush1.msra.mxu0 0.0
  %52 = vmatprep.subr.mxu0 0.0
  %53 = vmatpush1.msra.mxu0 0.0
  %54 = vmatprep.subr.mxu0 0.0
  %55 = vmatpush1.msra.mxu0 0.0
  %56 = vmatprep.subr.mxu0 0.0
  %57 = vmatpush1.msra.mxu0 0.0
  %58 = vmatprep.subr.mxu0 0.0
  %59 = vmatpush1.msra.mxu0 0.0
  %60 = vmatprep.subr.mxu0 0.0
  %61 = vmatpush1.msra.mxu0 0.0
  %62 = vmatprep.subr.mxu0 0.0
  %63 = vmatpush1.msra.mxu0 0.0
  %64 = vmatprep.subr.mxu0 0.0
  %65 = vmatpush1.msra.mxu0 0.0
  %66 = vmatprep.subr.mxu0 0.0
  %67 = vmatpush1.msra.mxu0 0.0
  %68 = vmatprep.subr.mxu0 0.0
  %69 = vmatpush1.msra.mxu0 0.0
  %70 = vmatprep.subr.mxu0 0.0
  %71 = vmatpush1.msra.mxu0 0.0
  %72 = vmatprep.subr.mxu0 0.0
  %73 = vmatpush1.msra.mxu0 %v18
  %74 = vmatprep.subr.mxu0 0.0
  %75 = vmatpush1.msra.mxu0 %v17
  %76 = vmatprep.subr.mxu0 0.0
  %77 = vmatpush1.msra.mxu0 %v16
  %78 = vmatprep.subr.mxu0 0.0
  %79 = vmatpush1.msra.mxu0 %v15
  %80 = vmatprep.subr.mxu0 0.0
  %81 = vmatpush2.msra.mxu0 0.0
  %82 = vmatprep.subr.mxu0 0.0
  %83 = vmatpush2.msra.mxu0 0.0
  %84 = vmatprep.subr.mxu0 0.0
  %85 = vmatpush2.msra.mxu0 0.0
  %86 = vmatprep.subr.mxu0 0.0
  %87 = vmatpush2.msra.mxu0 0.0
  %88 = vmatprep.subr.mxu0 0.0
  %89 = vmatpush2.msra.mxu0 0.0
  %90 = vmatprep.subr.mxu0 0.0
  %91 = vmatpush2.msra.mxu0 0.0
  %92 = vmatprep.subr.mxu0 0.0
  %93 = vmatpush2.msra.mxu0 0.0
  %94 = vmatprep.subr.mxu0 0.0
  %95 = vmatpush2.msra.mxu0 0.0
  %96 = vmatprep.subr.mxu0 0.0
  %97 = vmatpush2.msra.mxu0 0.0
  %98 = vmatprep.subr.mxu0 0.0
  %99 = vmatpush2.msra.mxu0 0.0
  %100 = vmatprep.subr.mxu0 0.0
  %101 = vmatpush2.msra.mxu0 0.0
  %102 = vmatprep.subr.mxu0 0.0
  %103 = vmatpush2.msra.mxu0 0.0
  %104 = vmatprep.subr.mxu0 0.0
  %105 = vmatpush2.msra.mxu0 0.0
  %106 = vmatprep.subr.mxu0 0.0
  %107 = vmatpush2.msra.mxu0 0.0
  %108 = vmatprep.subr.mxu0 0.0
  %109 = vmatpush2.msra.mxu0 0.0
  %110 = vmatprep.subr.mxu0 0.0
  %111 = vmatpush2.msra.mxu0 0.0
  %112 = vmatprep.mubr.f32.mxu0 0.0
  %113 = vmatmul.mubr.f32.gmra.mxu0 %v40
  %v114 = vpop.f32.mrf.mxu0
  %v115 = vadd.f32 %v22, %v114
  %v116 = vpop.f32.mrf.mxu0
  %117 = vmatprep.mubr.f32.mxu0 0.0
  %118 = vmatmul.mubr.f32.gmra.mxu0 %v42
  %v119 = vpop.f32.mrf.mxu0
  %v120 = vadd.f32 %v27, %v119
  %v121 = vpop.f32.mrf.mxu0
  %122 = vmatprep.mubr.f32.mxu0 0.0
  %123 = vmatmul.mubr.f32.gmra.mxu0 %v44
  %v124 = vpop.f32.mrf.mxu0
  %v125 = vadd.f32 %v32, %v124
  %v126 = vpop.f32.mrf.mxu0
  %127 = vmatprep.mubr.f32.mxu0 0.0
  %128 = vmatmul.mubr.f32.gmra.mxu0 %v46
  %v129 = vpop.f32.mrf.mxu0
  %v130 = vadd.f32 %v37, %v129
  %v131 = vpop.f32.mrf.mxu0
  %132 = vdwg.mxu0
  %v133 = vmax.f32 %v115, 0.0
  %v134 = vmax.f32 %v120, 0.0
  %v135 = vmax.f32 %v125, 0.0
  %v136 = vmax.f32 %v130, 0.0
  %v137 = vld [vmem:[%s1 + $0x20] sm:$0xff]
  %v138 = vld [vmem:[%s1 + $0x28] sm:$0xff]
  %v139 = vld [vmem:[%s1 + $0x30] sm:$0xff]
  %v140 = vld [vmem:[%s1 + $0x38] sm:$0xff]
  %142 = vset.pattern.permute.xlu0 32
  %143 = vperm.xlu0 %142, %v137
  %v144 = vpop.permute.xlu0 %143
  %147 = vset.pattern.permute.xlu0 32
  %148 = vperm.xlu0 %147, %v138
  %v149 = vpop.permute.xlu0 %148
  %152 = vset.pattern.permute.xlu0 32
  %153 = vperm.xlu0 %152, %v139
  %v154 = vpop.permute.xlu0 %153
  %157 = vset.pattern.permute.xlu0 32
  %158 = vperm.xlu0 %157, %v140
  %v159 = vpop.permute.xlu0 %158
  %v161 = vsel %vm39, %v137, 0
  %v163 = vsel %vm39, %v138, 0
  %v165 = vsel %vm39, %v139, 0
  %v167 = vsel %vm39, %v140, 0
  %169 = vmatprep.subr.mxu0 0.0
  %170 = vmatpush1.msra.mxu0 0.0
  %171 = vmatprep.subr.mxu0 0.0
  %172 = vmatpush1.msra.mxu0 0.0
  %173 = vmatprep.subr.mxu0 0.0
  %174 = vmatpush1.msra.mxu0 0.0
  %175 = vmatprep.subr.mxu0 0.0
  %176 = vmatpush1.msra.mxu0 0.0
  %177 = vmatprep.subr.mxu0 0.0
  %178 = vmatpush1.msra.mxu0 0.0
  %179 = vmatprep.subr.mxu0 0.0
  %180 = vmatpush1.msra.mxu0 0.0
  %181 = vmatprep.subr.mxu0 0.0
  %182 = vmatpush1.msra.mxu0 0.0
  %183 = vmatprep.subr.mxu0 0.0
  %184 = vmatpush1.msra.mxu0 0.0
  %185 = vmatprep.subr.mxu0 0.0
  %186 = vmatpush1.msra.mxu0 0.0
  %187 = vmatprep.subr.mxu0 0.0
  %188 = vmatpush1.msra.mxu0 0.0
  %189 = vmatprep.subr.mxu0 0.0
  %190 = vmatpush1.msra.mxu0 0.0
  %191 = vmatprep.subr.mxu0 0.0
  %192 = vmatpush1.msra.mxu0 0.0
  %193 = vmatprep.subr.mxu0 0.0
  %194 = vmatpush1.msra.mxu0 %v136
  %195 = vmatprep.subr.mxu0 0.0
  %196 = vmatpush1.msra.mxu0 %v135
  %197 = vmatprep.subr.mxu0 0.0
  %198 = vmatpush1.msra.mxu0 %v134
  %199 = vmatprep.subr.mxu0 0.0
  %200 = vmatpush1.msra.mxu0 %v133
  %201 = vmatprep.subr.mxu0 0.0
  %202 = vmatpush2.msra.mxu0 0.0
  %203 = vmatprep.subr.mxu0 0.0
  %204 = vmatpush2.msra.mxu0 0.0
  %205 = vmatprep.subr.mxu0 0.0
  %206 = vmatpush2.msra.mxu0 0.0
  %207 = vmatprep.subr.mxu0 0.0
  %208 = vmatpush2.msra.mxu0 0.0
  %209 = vmatprep.subr.mxu0 0.0
  %210 = vmatpush2.msra.mxu0 0.0
  %211 = vmatprep.subr.mxu0 0.0
  %212 = vmatpush2.msra.mxu0 0.0
  %213 = vmatprep.subr.mxu0 0.0
  %214 = vmatpush2.msra.mxu0 0.0
  %215 = vmatprep.subr.mxu0 0.0
  %216 = vmatpush2.msra.mxu0 0.0
  %217 = vmatprep.subr.mxu0 0.0
  %218 = vmatpush2.msra.mxu0 0.0
  %219 = vmatprep.subr.mxu0 0.0
  %220 = vmatpush2.msra.mxu0 0.0
  %221 = vmatprep.subr.mxu0 0.0
  %222 = vmatpush2.msra.mxu0 0.0
  %223 = vmatprep.subr.mxu0 0.0
  %224 = vmatpush2.msra.mxu0 0.0
  %225 = vmatprep.subr.mxu0 0.0
  %226 = vmatpush2.msra.mxu0 0.0
  %227 = vmatprep.subr.mxu0 0.0
  %228 = vmatpush2.msra.mxu0 0.0
  %229 = vmatprep.subr.mxu0 0.0
  %230 = vmatpush2.msra.mxu0 0.0
  %231 = vmatprep.subr.mxu0 0.0
  %232 = vmatpush2.msra.mxu0 0.0
  %233 = vmatprep.mubr.f32.mxu0 0.0
  %234 = vmatmul.mubr.f32.gmra.mxu0 %v161
  %v235 = vpop.f32.mrf.mxu0
  %v236 = vadd.f32 %v144, %v235
  %v237 = vpop.f32.mrf.mxu0
  %238 = vmatprep.mubr.f32.mxu0 0.0
  %239 = vmatmul.mubr.f32.gmra.mxu0 %v163
  %v240 = vpop.f32.mrf.mxu0
  %v241 = vadd.f32 %v149, %v240
  %v242 = vpop.f32.mrf.mxu0
  %243 = vmatprep.mubr.f32.mxu0 0.0
  %244 = vmatmul.mubr.f32.gmra.mxu0 %v165
  %v245 = vpop.f32.mrf.mxu0
  %v246 = vadd.f32 %v154, %v245
  %v247 = vpop.f32.mrf.mxu0
  %248 = vmatprep.mubr.f32.mxu0 0.0
  %249 = vmatmul.mubr.f32.gmra.mxu0 %v167
  %v250 = vpop.f32.mrf.mxu0
  %v251 = vadd.f32 %v159, %v250
  %v252 = vpop.f32.mrf.mxu0
  %253 = vdwg.mxu0
  %v254 = vmax.f32 %v236, 0.0
  %v255 = vmax.f32 %v241, 0.0
  %v256 = vmax.f32 %v246, 0.0
  %v257 = vmax.f32 %v251, 0.0
  %v258 = vld [vmem:[%s1 + $0x40] sm:$0xff]
  %v259 = vld [vmem:[%s1 + $0x48] sm:$0xff]
  %v260 = vld [vmem:[%s1 + $0x50] sm:$0xff]
  %v261 = vld [vmem:[%s1 + $0x58] sm:$0xff]
  %263 = vset.pattern.permute.xlu0 32
  %264 = vperm.xlu0 %263, %v258
  %v265 = vpop.permute.xlu0 %264
  %268 = vset.pattern.permute.xlu0 32
  %269 = vperm.xlu0 %268, %v259
  %v270 = vpop.permute.xlu0 %269
  %273 = vset.pattern.permute.xlu0 32
  %274 = vperm.xlu0 %273, %v260
  %v275 = vpop.permute.xlu0 %274
  %278 = vset.pattern.permute.xlu0 32
  %279 = vperm.xlu0 %278, %v261
  %v280 = vpop.permute.xlu0 %279
  %v282 = vsel %vm39, %v258, 0
  %v284 = vsel %vm39, %v259, 0
  %v286 = vsel %vm39, %v260, 0
  %v288 = vsel %vm39, %v261, 0
  %290 = vmatprep.subr.mxu0 0.0
  %291 = vmatpush1.msra.mxu0 0.0
  %292 = vmatprep.subr.mxu0 0.0
  %293 = vmatpush1.msra.mxu0 0.0
  %294 = vmatprep.subr.mxu0 0.0
  %295 = vmatpush1.msra.mxu0 0.0
  %296 = vmatprep.subr.mxu0 0.0
  %297 = vmatpush1.msra.mxu0 0.0
  %298 = vmatprep.subr.mxu0 0.0
  %299 = vmatpush1.msra.mxu0 0.0
  %300 = vmatprep.subr.mxu0 0.0
  %301 = vmatpush1.msra.mxu0 0.0
  %302 = vmatprep.subr.mxu0 0.0
  %303 = vmatpush1.msra.mxu0 0.0
  %304 = vmatprep.subr.mxu0 0.0
  %305 = vmatpush1.msra.mxu0 0.0
  %306 = vmatprep.subr.mxu0 0.0
  %307 = vmatpush1.msra.mxu0 0.0
  %308 = vmatprep.subr.mxu0 0.0
  %309 = vmatpush1.msra.mxu0 0.0
  %310 = vmatprep.subr.mxu0 0.0
  %311 = vmatpush1.msra.mxu0 0.0
  %312 = vmatprep.subr.mxu0 0.0
  %313 = vmatpush1.msra.mxu0 0.0
  %314 = vmatprep.subr.mxu0 0.0
  %315 = vmatpush1.msra.mxu0 %v257
  %316 = vmatprep.subr.mxu0 0.0
  %317 = vmatpush1.msra.mxu0 %v256
  %318 = vmatprep.subr.mxu0 0.0
  %319 = vmatpush1.msra.mxu0 %v255
  %320 = vmatprep.subr.mxu0 0.0
  %321 = vmatpush1.msra.mxu0 %v254
  %322 = vmatprep.subr.mxu0 0.0
  %323 = vmatpush2.msra.mxu0 0.0
  %324 = vmatprep.subr.mxu0 0.0
  %325 = vmatpush2.msra.mxu0 0.0
  %326 = vmatprep.subr.mxu0 0.0
  %327 = vmatpush2.msra.mxu0 0.0
  %328 = vmatprep.subr.mxu0 0.0
  %329 = vmatpush2.msra.mxu0 0.0
  %330 = vmatprep.subr.mxu0 0.0
  %331 = vmatpush2.msra.mxu0 0.0
  %332 = vmatprep.subr.mxu0 0.0
  %333 = vmatpush2.msra.mxu0 0.0
  %334 = vmatprep.subr.mxu0 0.0
  %335 = vmatpush2.msra.mxu0 0.0
  %336 = vmatprep.subr.mxu0 0.0
  %337 = vmatpush2.msra.mxu0 0.0
  %338 = vmatprep.subr.mxu0 0.0
  %339 = vmatpush2.msra.mxu0 0.0
  %340 = vmatprep.subr.mxu0 0.0
  %341 = vmatpush2.msra.mxu0 0.0
  %342 = vmatprep.subr.mxu0 0.0
  %343 = vmatpush2.msra.mxu0 0.0
  %344 = vmatprep.subr.mxu0 0.0
  %345 = vmatpush2.msra.mxu0 0.0
  %346 = vmatprep.subr.mxu0 0.0
  %347 = vmatpush2.msra.mxu0 0.0
  %348 = vmatprep.subr.mxu0 0.0
  %349 = vmatpush2.msra.mxu0 0.0
  %350 = vmatprep.subr.mxu0 0.0
  %351 = vmatpush2.msra.mxu0 0.0
  %352 = vmatprep.subr.mxu0 0.0
  %353 = vmatpush2.msra.mxu0 0.0
  %354 = vmatprep.mubr.f32.mxu0 0.0
  %355 = vmatmul.mubr.f32.gmra.mxu0 %v282
  %v356 = vpop.f32.mrf.mxu0
  %v357 = vadd.f32 %v265, %v356
  %v358 = vpop.f32.mrf.mxu0
  %359 = vmatprep.mubr.f32.mxu0 0.0
  %360 = vmatmul.mubr.f32.gmra.mxu0 %v284
  %v361 = vpop.f32.mrf.mxu0
  %v362 = vadd.f32 %v270, %v361
  %v363 = vpop.f32.mrf.mxu0
  %364 = vmatprep.mubr.f32.mxu0 0.0
  %365 = vmatmul.mubr.f32.gmra.mxu0 %v286
  %v366 = vpop.f32.mrf.mxu0
  %v367 = vadd.f32 %v275, %v366
  %v368 = vpop.f32.mrf.mxu0
  %369 = vmatprep.mubr.f32.mxu0 0.0
  %370 = vmatmul.mubr.f32.gmra.mxu0 %v288
  %v371 = vpop.f32.mrf.mxu0
  %v372 = vadd.f32 %v280, %v371
  %v373 = vpop.f32.mrf.mxu0
  %374 = vdwg.mxu0
  %v375 = vmax.f32 %v357, 0.0
  %v376 = vmax.f32 %v362, 0.0
  %v377 = vmax.f32 %v367, 0.0
  %v378 = vmax.f32 %v372, 0.0
  %v379 = vld [vmem:[%s1 + $0x60] sm:$0xff]
  %v380 = vld [vmem:[%s1 + $0x68] sm:$0xff]
  %v381 = vld [vmem:[%s1 + $0x70] sm:$0xff]
  %v382 = vld [vmem:[%s1 + $0x78] sm:$0xff]
  %384 = vset.pattern.permute.xlu0 32
  %385 = vperm.xlu0 %384, %v379
  %v386 = vpop.permute.xlu0 %385
  %389 = vset.pattern.permute.xlu0 32
  %390 = vperm.xlu0 %389, %v380
  %v391 = vpop.permute.xlu0 %390
  %394 = vset.pattern.permute.xlu0 32
  %395 = vperm.xlu0 %394, %v381
  %v396 = vpop.permute.xlu0 %395
  %399 = vset.pattern.permute.xlu0 32
  %400 = vperm.xlu0 %399, %v382
  %v401 = vpop.permute.xlu0 %400
  %v403 = vsel %vm39, %v379, 0
  %v405 = vsel %vm39, %v380, 0
  %v407 = vsel %vm39, %v381, 0
  %v409 = vsel %vm39, %v382, 0
  %411 = vmatprep.subr.mxu0 0.0
  %412 = vmatpush1.msra.mxu0 0.0
  %413 = vmatprep.subr.mxu0 0.0
  %414 = vmatpush1.msra.mxu0 0.0
  %415 = vmatprep.subr.mxu0 0.0
  %416 = vmatpush1.msra.mxu0 0.0
  %417 = vmatprep.subr.mxu0 0.0
  %418 = vmatpush1.msra.mxu0 0.0
  %419 = vmatprep.subr.mxu0 0.0
  %420 = vmatpush1.msra.mxu0 0.0
  %421 = vmatprep.subr.mxu0 0.0
  %422 = vmatpush1.msra.mxu0 0.0
  %423 = vmatprep.subr.mxu0 0.0
  %424 = vmatpush1.msra.mxu0 0.0
  %425 = vmatprep.subr.mxu0 0.0
  %426 = vmatpush1.msra.mxu0 0.0
  %427 = vmatprep.subr.mxu0 0.0
  %428 = vmatpush1.msra.mxu0 0.0
  %429 = vmatprep.subr.mxu0 0.0
  %430 = vmatpush1.msra.mxu0 0.0
  %431 = vmatprep.subr.mxu0 0.0
  %432 = vmatpush1.msra.mxu0 0.0
  %433 = vmatprep.subr.mxu0 0.0
  %434 = vmatpush1.msra.mxu0 0.0
  %435 = vmatprep.subr.mxu0 0.0
  %436 = vmatpush1.msra.mxu0 %v378
  %437 = vmatprep.subr.mxu0 0.0
  %438 = vmatpush1.msra.mxu0 %v377
  %439 = vmatprep.subr.mxu0 0.0
  %440 = vmatpush1.msra.mxu0 %v376
  %441 = vmatprep.subr.mxu0 0.0
  %442 = vmatpush1.msra.mxu0 %v375
  %443 = vmatprep.subr.mxu0 0.0
  %444 = vmatpush2.msra.mxu0 0.0
  %445 = vmatprep.subr.mxu0 0.0
  %446 = vmatpush2.msra.mxu0 0.0
  %447 = vmatprep.subr.mxu0 0.0
  %448 = vmatpush2.msra.mxu0 0.0
  %449 = vmatprep.subr.mxu0 0.0
  %450 = vmatpush2.msra.mxu0 0.0
  %451 = vmatprep.subr.mxu0 0.0
  %452 = vmatpush2.msra.mxu0 0.0
  %453 = vmatprep.subr.mxu0 0.0
  %454 = vmatpush2.msra.mxu0 0.0
  %455 = vmatprep.subr.mxu0 0.0
  %456 = vmatpush2.msra.mxu0 0.0
  %457 = vmatprep.subr.mxu0 0.0
  %458 = vmatpush2.msra.mxu0 0.0
  %459 = vmatprep.subr.mxu0 0.0
  %460 = vmatpush2.msra.mxu0 0.0
  %461 = vmatprep.subr.mxu0 0.0
  %462 = vmatpush2.msra.mxu0 0.0
  %463 = vmatprep.subr.mxu0 0.0
  %464 = vmatpush2.msra.mxu0 0.0
  %465 = vmatprep.subr.mxu0 0.0
  %466 = vmatpush2.msra.mxu0 0.0
  %467 = vmatprep.subr.mxu0 0.0
  %468 = vmatpush2.msra.mxu0 0.0
  %469 = vmatprep.subr.mxu0 0.0
  %470 = vmatpush2.msra.mxu0 0.0
  %471 = vmatprep.subr.mxu0 0.0
  %472 = vmatpush2.msra.mxu0 0.0
  %473 = vmatprep.subr.mxu0 0.0
  %474 = vmatpush2.msra.mxu0 0.0
  %475 = vmatprep.mubr.f32.mxu0 0.0
  %476 = vmatmul.mubr.f32.gmra.mxu0 %v403
  %v477 = vpop.f32.mrf.mxu0
  %v478 = vadd.f32 %v386, %v477
  %v479 = vpop.f32.mrf.mxu0
  %480 = vmatprep.mubr.f32.mxu0 0.0
  %481 = vmatmul.mubr.f32.gmra.mxu0 %v405
  %v482 = vpop.f32.mrf.mxu0
  %v483 = vadd.f32 %v391, %v482
  %v484 = vpop.f32.mrf.mxu0
  %485 = vmatprep.mubr.f32.mxu0 0.0
  %486 = vmatmul.mubr.f32.gmra.mxu0 %v407
  %v487 = vpop.f32.mrf.mxu0
  %v488 = vadd.f32 %v396, %v487
  %v489 = vpop.f32.mrf.mxu0
  %490 = vmatprep.mubr.f32.mxu0 0.0
  %491 = vmatmul.mubr.f32.gmra.mxu0 %v409
  %v492 = vpop.f32.mrf.mxu0
  %v493 = vadd.f32 %v401, %v492
  %v494 = vpop.f32.mrf.mxu0
  %495 = vdwg.mxu0
  %v496 = vmax.f32 %v478, 0.0
  %v497 = vmax.f32 %v483, 0.0
  %v498 = vmax.f32 %v488, 0.0
  %v499 = vmax.f32 %v493, 0.0
  %v500 = vld [vmem:[%s1 + $0x80] sm:$0xff]
  %v501 = vld [vmem:[%s1 + $0x88] sm:$0xff]
  %503 = vset.pattern.permute.xlu0 32
  %504 = vperm.xlu0 %503, %v500
  %v505 = vpop.permute.xlu0 %504
  %508 = vset.pattern.permute.xlu0 32
  %509 = vperm.xlu0 %508, %v501
  %v510 = vpop.permute.xlu0 %509
  %v512 = vsel %vm39, %v500, 0
  %v514 = vsel %vm39, %v501, 0
  %516 = vmatprep.subr.mxu0 0.0
  %517 = vmatpush1.msra.mxu0 0.0
  %518 = vmatprep.subr.mxu0 0.0
  %519 = vmatpush1.msra.mxu0 0.0
  %520 = vmatprep.subr.mxu0 0.0
  %521 = vmatpush1.msra.mxu0 0.0
  %522 = vmatprep.subr.mxu0 0.0
  %523 = vmatpush1.msra.mxu0 0.0
  %524 = vmatprep.subr.mxu0 0.0
  %525 = vmatpush1.msra.mxu0 0.0
  %526 = vmatprep.subr.mxu0 0.0
  %527 = vmatpush1.msra.mxu0 0.0
  %528 = vmatprep.subr.mxu0 0.0
  %529 = vmatpush1.msra.mxu0 0.0
  %530 = vmatprep.subr.mxu0 0.0
  %531 = vmatpush1.msra.mxu0 0.0
  %532 = vmatprep.subr.mxu0 0.0
  %533 = vmatpush1.msra.mxu0 0.0
  %534 = vmatprep.subr.mxu0 0.0
  %535 = vmatpush1.msra.mxu0 0.0
  %536 = vmatprep.subr.mxu0 0.0
  %537 = vmatpush1.msra.mxu0 0.0
  %538 = vmatprep.subr.mxu0 0.0
  %539 = vmatpush1.msra.mxu0 0.0
  %540 = vmatprep.subr.mxu0 0.0
  %541 = vmatpush1.msra.mxu0 %v499
  %542 = vmatprep.subr.mxu0 0.0
  %543 = vmatpush1.msra.mxu0 %v498
  %544 = vmatprep.subr.mxu0 0.0
  %545 = vmatpush1.msra.mxu0 %v497
  %546 = vmatprep.subr.mxu0 0.0
  %547 = vmatpush1.msra.mxu0 %v496
  %548 = vmatprep.subr.mxu0 0.0
  %549 = vmatpush2.msra.mxu0 0.0
  %550 = vmatprep.subr.mxu0 0.0
  %551 = vmatpush2.msra.mxu0 0.0
  %552 = vmatprep.subr.mxu0 0.0
  %553 = vmatpush2.msra.mxu0 0.0
  %554 = vmatprep.subr.mxu0 0.0
  %555 = vmatpush2.msra.mxu0 0.0
  %556 = vmatprep.subr.mxu0 0.0
  %557 = vmatpush2.msra.mxu0 0.0
  %558 = vmatprep.subr.mxu0 0.0
  %559 = vmatpush2.msra.mxu0 0.0
  %560 = vmatprep.subr.mxu0 0.0
  %561 = vmatpush2.msra.mxu0 0.0
  %562 = vmatprep.subr.mxu0 0.0
  %563 = vmatpush2.msra.mxu0 0.0
  %564 = vmatprep.subr.mxu0 0.0
  %565 = vmatpush2.msra.mxu0 0.0
  %566 = vmatprep.subr.mxu0 0.0
  %567 = vmatpush2.msra.mxu0 0.0
  %568 = vmatprep.subr.mxu0 0.0
  %569 = vmatpush2.msra.mxu0 0.0
  %570 = vmatprep.subr.mxu0 0.0
  %571 = vmatpush2.msra.mxu0 0.0
  %572 = vmatprep.subr.mxu0 0.0
  %573 = vmatpush2.msra.mxu0 0.0
  %574 = vmatprep.subr.mxu0 0.0
  %575 = vmatpush2.msra.mxu0 0.0
  %576 = vmatprep.subr.mxu0 0.0
  %577 = vmatpush2.msra.mxu0 0.0
  %578 = vmatprep.subr.mxu0 0.0
  %579 = vmatpush2.msra.mxu0 0.0
  %580 = vmatprep.mubr.f32.mxu0 0.0
  %581 = vmatmul.mubr.f32.gmra.mxu0 %v512
  %v582 = vpop.f32.mrf.mxu0
  %v583 = vadd.f32 %v505, %v582
  %v584 = vpop.f32.mrf.mxu0
  %585 = vmatprep.mubr.f32.mxu0 0.0
  %586 = vmatmul.mubr.f32.gmra.mxu0 %v514
  %v587 = vpop.f32.mrf.mxu0
  %v588 = vadd.f32 %v510, %v587
  %v589 = vpop.f32.mrf.mxu0
  %590 = vdwg.mxu0
  %v591 = vtanh.pop %v583
  %vm592 = vcmask 15360
  %593 = vst.msk [vmem:[%s2] sm:$0xff] %vm592, %v591
  %594 = vst.msk [vmem:[%s2 + $0x8] sm:$0xff] %vm592, %v588
  // Predicated region
  $region10: #{tpu_custom_call.1} parent=0 // pred_check
    _
  $region11: #{tpu_custom_call.1} parent=0 // pred_check_branch
    %596 = sbr.rel (0) target = $region13
  $region12: #{tpu_custom_call.1} parent=0 // pred_region
    _
  $region13: #{tpu_custom_call.1} parent=0 // pred_fallthru
    _
  // Predicated region
  $region14: #{tpu_custom_call.1} parent=0 // pred_check
    _
  $region15: #{tpu_custom_call.1} parent=0 // pred_check_branch
    %598 = sbr.rel (0) target = $region17
  $region16: #{tpu_custom_call.1} parent=0 // pred_region
    _
  $region17: #{tpu_custom_call.1} parent=0 // pred_fallthru
    _

</llo_original>
